<compile_context>
chip_gen: v5e
topology: v5e:2x2
jax: 0.10.0
libtpu: 0.0.40
codegen_flags: <defaults>
</compile_context>

<pallas_src>
import jax
import jax.numpy as jnp
from jax.experimental import pallas as pl
from jax.experimental.pallas import tpu as pltpu

_LANES = 128
_FALLBACK_BYTES = 1 << 20  # below ~1 MiB of x traffic, plain XLA beats kernel overhead


def _linear_kernel(x_ref, w_ref, b_ref, o_ref):
    """One packed batch tile.

    x_ref: (TBp, Dp) VMEM  -- TBp packed input rows (Dp = k*D lane-dense features)
    w_ref: (k,  Dp)  VMEM  -- block-diagonal weight (constant block index -> resident)
    b_ref: (1,)      SMEM  -- bias scalar
    o_ref: (k, TBp)  VMEM  -- lane-dense output tile; o[j, r] = w . x_row(r*k + j) + b
    """
    res = jax.lax.dot_general(
        w_ref[...],
        x_ref[...],
        dimension_numbers=(((1,), (1,)), ((), ())),   # contract feature dim of both
        preferred_element_type=jnp.float32,
    )
    o_ref[...] = (res + b_ref[0]).astype(o_ref.dtype)


def _vmem_capacity_bytes() -> int:
    try:
        return int(pltpu.get_tpu_info().vmem_capacity_bytes)
    except Exception:
        return 64 * 1024 * 1024  # conservative default: v7x per-TC VMEM


def linear_forward(x, weight, bias):
    """nn.Linear(input_size, 1) forward: y = x @ weight.T + bias.

    x: (B, D), weight: (1, D), bias: (1,)  ->  (B, 1)
    """
    B, D = x.shape
    assert weight.shape == (1, D) and bias.shape == (1,)
    itemsize = x.dtype.itemsize

    # Small problems: pallas_call dispatch + pipeline warmup dominates ~2*B*D flops.
    if B * D * itemsize < _FALLBACK_BYTES:
        return x @ weight.T + bias

    # --- lane packing: for D < 128, pack k logical rows per packed row so the x
    # tile and the (k, TBp) output tile are lane-dense in the (8,128) layout. ---
    k = max(1, _LANES // D)
    if k > 1 and B % k != 0:
        k = 1                                   # ragged edge still handled below
    Dp = k * D
    Bp = B // k
    x_p = x.reshape(Bp, Dp)                     # contiguous row-major reshape (no copy)
    if k > 1:
        w_p = jnp.kron(jnp.eye(k, dtype=weight.dtype), weight)   # (k, k*D) block-diag
    else:
        w_p = weight

    # --- byte-based, generation-aware tile sizing (per x buffer, double-buffered) ---
    vmem_cap = _vmem_capacity_bytes()
    per_buffer = max(2 << 20, vmem_cap // 8)    # ~8 MiB on v7x, ~16 MiB on v5e/v6e
    dp_vmem = pl.cdiv(Dp, _LANES) * _LANES      # VMEM lane padding of the last dim
    tbp = (per_buffer // (itemsize * dp_vmem)) // _LANES * _LANES
    if tbp < _LANES:
        # TODO(synk): for very large input_size, add an "arbitrary" reduction grid
        # axis over D with an f32 VMEM accumulator instead of this XLA fallback.
        return x @ weight.T + bias

    bp_ceil = pl.cdiv(Bp, _LANES) * _LANES
    if bp_ceil >= 2 * _LANES:
        # keep at least 2 grid steps so v7x's two TensorCores both get work
        tbp = min(tbp, max(_LANES, (bp_ceil // 2) // _LANES * _LANES))
    tbp = min(tbp, bp_ceil)
    n_tiles = pl.cdiv(Bp, tbp)

    # vmem limit: actual double-buffered usage + headroom, capped at physical VMEM.
    k_pad = pl.cdiv(k, 8) * 8
    usage = (2 * tbp * dp_vmem * itemsize        # x buffers
             + 2 * k_pad * tbp * itemsize        # output buffers
             + 2 * k_pad * dp_vmem * itemsize)   # weight buffers
    vmem_limit = int(min(vmem_cap, usage + (12 << 20)))

    cost = pl.CostEstimate(
        flops=2 * B * D,
        transcendentals=0,
        bytes_accessed=itemsize * (B * D + D + B),
    )

    out = pl.pallas_call(
        _linear_kernel,
        out_shape=jax.ShapeDtypeStruct((k, n_tiles * tbp), x.dtype),
        grid_spec=pltpu.PrefetchScalarGridSpec(
            num_scalar_prefetch=0,
            grid=(n_tiles,),
            in_specs=[
                pl.BlockSpec((tbp, Dp), lambda i: (i, 0)),           # x tile (ragged edge ok)
                pl.BlockSpec((k, Dp), lambda i: (0, 0)),             # weight, resident
                pl.BlockSpec(memory_space=pltpu.MemorySpace.SMEM),   # bias scalar
            ],
            out_specs=pl.BlockSpec((k, tbp), lambda i: (0, i)),      # lane-dense tile
        ),
        compiler_params=pltpu.CompilerParams(
            dimension_semantics=("parallel",),    # shard batch tiles across TCs (v7x)
            vmem_limit_bytes=vmem_limit,
        ),
        cost_estimate=cost,
    )(x_p, w_p, bias)

    # De-interleave: out[j, p] = y[p*k + j]; tail beyond B is padding/garbage -> sliced.
    return out.T.reshape(-1)[:B].reshape(B, 1)


if __name__ == "__main__":
    key = jax.random.PRNGKey(0)
    k_x1, k_w1, k_b1, k_x2, k_w2, k_b2, k_x3 = jax.random.split(key, 7)

    def torch_like_params(kw, kb, d):
        bound = 1.0 / (d ** 0.5)           # PyTorch-like U(-1/sqrt(in), 1/sqrt(in))
        w = jax.random.uniform(kw, (1, d), jnp.float32, -bound, bound)
        b = jax.random.uniform(kb, (1,), jnp.float32, -bound, bound)
        return w, b

    def ref(x, w, b):
        return jnp.sum(x * w, axis=-1, keepdims=True) + b

    # Case 1: small D -> lane-packed Pallas path (k=4) with a ragged last tile.
    B1, D1 = 16900, 32
    w1, b1 = torch_like_params(k_w1, k_b1, D1)
    x1 = jax.random.normal(k_x1, (B1, D1), jnp.float32)
    y1 = linear_forward(x1, w1, b1)
    jax.block_until_ready(y1)
    assert y1.shape == (B1, 1)
    assert jnp.allclose(y1, ref(x1, w1, b1), atol=1e-4, rtol=1e-4)

    # Case 2: D >= 128 -> unpacked Pallas path (k=1).
    B2, D2 = 2048, 256
    w2, b2 = torch_like_params(k_w2, k_b2, D2)
    x2 = jax.random.normal(k_x2, (B2, D2), jnp.float32)
    y2 = linear_forward(x2, w2, b2)
    jax.block_until_ready(y2)
    assert y2.shape == (B2, 1)
    assert jnp.allclose(y2, ref(x2, w2, b2), atol=1e-3, rtol=1e-3)

    # Case 3: tiny problem -> traffic-based XLA fallback path.
    x3 = jax.random.normal(k_x3, (64, D1), jnp.float32)
    y3 = linear_forward(x3, w1, b1)
    jax.block_until_ready(y3)
    assert y3.shape == (64, 1)
    assert jnp.allclose(y3, ref(x3, w1, b1), atol=1e-4, rtol=1e-4)

    print("KERNEL_OK")
</pallas_src>

<mosaic_0001>
module attributes {stable_mosaic.version = 11 : i64} {
  func.func @_linear_kernel(%arg0: i32, %arg1: memref<2176x128xf32, #tpu.memory_space<vmem>>, %arg2: memref<4x128xf32, #tpu.memory_space<vmem>>, %arg3: memref<1xf32, #tpu.memory_space<smem>>, %arg4: memref<4x2176xf32, #tpu.memory_space<vmem>>) attributes {dimension_semantics = [#tpu.dimension_semantics<parallel>], iteration_bounds = array<i64: 2>, scalar_prefetch = 0 : i64, scratch_operands = 0 : i64, tpu.core_type = #tpu.core_type<tc>, window_params = [{transform_indices = @transform_0, window_bounds = array<i64: 2176, 128>}, {pipeline_mode = #tpu.pipeline_mode<synchronous>, transform_indices = @transform_1, window_bounds = array<i64: 4, 128>}, {transform_indices = @transform_2, window_bounds = array<i64: 1>}, {transform_indices = @transform_3, window_bounds = array<i64: 4, 2176>}]} {
    %c0 = arith.constant 0 : index
    %c0_0 = arith.constant 0 : index
    %0 = vector.load %arg2[%c0, %c0_0] : memref<4x128xf32, #tpu.memory_space<vmem>>, vector<4x128xf32>
    %c0_1 = arith.constant 0 : index
    %c0_2 = arith.constant 0 : index
    %1 = vector.load %arg1[%c0_1, %c0_2] : memref<2176x128xf32, #tpu.memory_space<vmem>>, vector<2176x128xf32>
    %cst = arith.constant dense<0.000000e+00> : vector<4x2176xf32>
    %2 = tpu.matmul %0, %1, %cst {dimension_numbers = #tpu.dot_dimension_numbers<[1], [1], [0], [0], [0, 0, 1, 0], [], []>} : vector<4x128xf32>, vector<2176x128xf32>, vector<4x2176xf32> -> vector<4x2176xf32>
    %c0_3 = arith.constant 0 : index
    %3 = memref.load %arg3[%c0_3] : memref<1xf32, #tpu.memory_space<smem>>
    %4 = vector.broadcast %3 : f32 to vector<4x2176xf32>
    %5 = arith.addf %2, %4 : vector<4x2176xf32>
    %c0_4 = arith.constant 0 : index
    %c0_5 = arith.constant 0 : index
    %6 = vector.load %arg4[%c0_4, %c0_5] : memref<4x2176xf32, #tpu.memory_space<vmem>>, vector<4x2176xf32>
    tpu.vector_store %arg4[%c0_4, %c0_5], %5 {strides = array<i32>} : memref<4x2176xf32, #tpu.memory_space<vmem>>, vector<4x2176xf32>,
    return
  }
  func.func @transform_0(%arg0: i32) -> (i32, i32) {
    %c0_i32 = arith.constant 0 : i32
    %c0_i32_0 = arith.constant 0 : i32
    return %arg0, %c0_i32 : i32, i32
  }
  func.func @transform_1(%arg0: i32) -> (i32, i32) {
    %c0_i32 = arith.constant 0 : i32
    %c0_i32_0 = arith.constant 0 : i32
    %c0_i32_1 = arith.constant 0 : i32
    return %c0_i32, %c0_i32_0 : i32, i32
  }
  func.func @transform_2(%arg0: i32) -> i32 {
    %c0_i32 = arith.constant 0 : i32
    %c0_i32_0 = arith.constant 0 : i32
    return %c0_i32 : i32
  }
  func.func @transform_3(%arg0: i32) -> (i32, i32) {
    %c0_i32 = arith.constant 0 : i32
    %c0_i32_0 = arith.constant 0 : i32
    return %c0_i32, %arg0 : i32, i32
  }
}

</mosaic_0001>

<llo_original>
// kernel: tpu_custom_call.1
$region0: #{tpu_custom_call.1}
  #allocation0 [shape = 'u32[]', space=smem, size = 0x4, offset = 0x4, fixed_abs, tag = 'smem constant byte address 0x4 - core index']
  #allocation1 [shape = 'u32[72,128]{1,0:T(1,128)}', space=vmem, size = 0x9000, scoped, tag = 'internal scratch']
  #allocation2 [shape = 'f32[1]{0:T(128)S(6)}', space=smem, size = 0x200, scoped, tag = 'scoped memory for tpu_custom_call.1']
  %s0 = inlined_call_operand.hbm [shape: f32[4225,128], index: 0, kind: input, shape index: {}]
  %s1 = inlined_call_operand.hbm [shape: f32[4,128], index: 1, kind: input, shape index: {}]
  %s2 = inlined_call_operand.<no memory space> [shape: f32[1], index: 2, kind: input, shape index: {}]
  %s3 = inlined_call_operand.hbm [shape: f32[4,4352], index: 3, kind: output, shape index: {}]
  %s4 = sld [smem:[#allocation0]]
  $region53: #{tpu_custom_call.1} parent=0
    _
  %s6 = ssub.s32 1, %s4
  %s7 = scalar_select 0, %s6, %s4
  %8 = sst [smem:[#allocation2]] %s2
  $region1: #{tpu_custom_call.1} parent=0
    #allocation3 [shape = 'u8[2228224]{0}', space=vmem, size = 0x220000, scoped, tag = 'input window, operand 0']
    #allocation4 [shape = 's32[2]{0}', space=sflag, size = 0x8, scoped, tag = 'scoped memory for tpu_custom_call.1']
    #allocation5 [shape = 's32[2]{0}', space=sflag, size = 0x8, scoped, tag = 'scoped memory for tpu_custom_call.1']
    #allocation6 [shape = 'u8[2048]{0}', space=vmem, size = 0x800, scoped, tag = 'input window, operand 1, single buffered']
    #allocation7 [shape = 's32[1]{0}', space=sflag, size = 0x4, scoped, tag = 'scoped memory for tpu_custom_call.1']
    #allocation8 [shape = 'u8[69632]{0}', space=vmem, size = 0x11000, scoped, tag = 'output window, operand 0']
    %9 = vsyncpa [#allocation4], 0
    %s10 = scalar_lea.sflag [#allocation4], 1
    %11 = vsyncpa %s10, 0
    %12 = vsyncpa [#allocation7], 0
    %13 = vsyncpa [#allocation5], 0
    %s14 = scalar_lea.sflag [#allocation5], 1
    %15 = vsyncpa %s14, 0
    loop: start=0, step=1, limit=4
    $region2: #{tpu_custom_call.1} parent=1 // loop_pre_header
      _
    $region3: #{tpu_custom_call.1} parent=1 // loop_header
      %s17 = sphi 0, %s21
      %p18 = scmp.ge.s32.totalorder %s17, 4
      %s27 = sphi 0, %s29
      %s30 = sphi 0, %s27
      %s31 = sphi 0, %s30
      %s47 = sphi 0, %s31
      %s51 = sphi 0, %s51
      %s53 = sphi 0, %s51
      %s54 = sphi 0, %s53
      %s68 = sphi 0, %s54
      %s72 = sphi 0, %s72
      %s74 = sphi 0, %s72
      %s75 = sphi 0, %s74
      %s89 = sphi 0, %s75
      %s95 = sphi 0, %s97
      %s98 = sphi 0, %s95
      %s99 = sphi 0, %s98
      %s115 = sphi 0, %s99
    $region4: #{tpu_custom_call.1} parent=1 // loop_header_branch
      %20 = sbr.rel (%p18) target = $region8
    $region5: #{tpu_custom_call.1} parent=1 // loop_body
      %s22 = ssub.s32 %s17, 1
      %s23 = ssub.s32 %s17, 2
      %s24 = sadd.s32 %s17, 1
      %s25 = ssub.s32 %s17, %s24
      %p26 = scmp.eq.s32.totalorder %s25, 0
      %s28 = sadd.s32 %s27, 1
      %s29 = scalar_select %p26, %s27, %s28
      %p32 = pneg %p26
      %p33 = scmp.eq.s32.totalorder %s17, 1
      %p34 = por %p32, %p33
      %p35 = scmp.ne.s32.totalorder %s27, %s30
      %p36 = scmp.eq.s32.totalorder %s17, 0
      %p37 = por %p35, %p36
      %p38 = scmp.ne.s32.totalorder %s27, %s30
      %p39 = scmp.eq.s32.totalorder %s22, 1
      %p40 = por %p38, %p39
      %p41 = scmp.ne.s32.totalorder %s30, %s31
      %p42 = scmp.eq.s32.totalorder %s22, 0
      %p43 = por %p41, %p42
      %p44 = scmp.ne.s32.totalorder %s30, %s31
      %p45 = scmp.eq.s32.totalorder %s23, 1
      %p46 = por %p44, %p45
      %p48 = scmp.ne.s32.totalorder %s31, %s47
      %p49 = scmp.eq.s32.totalorder %s23, 0
      %p50 = por %p48, %p49
      %s52 = sadd.s32 %s51, 1
      %p55 = scmp.eq.s32.totalorder %s17, 1
      %p56 = scmp.ne.s32.totalorder %s51, %s53
      %p57 = scmp.eq.s32.totalorder %s17, 0
      %p58 = por %p56, %p57
      %p59 = scmp.ne.s32.totalorder %s51, %s53
      %p60 = scmp.eq.s32.totalorder %s22, 1
      %p61 = por %p59, %p60
      %p62 = scmp.ne.s32.totalorder %s53, %s54
      %p63 = scmp.eq.s32.totalorder %s22, 0
      %p64 = por %p62, %p63
      %p65 = scmp.ne.s32.totalorder %s53, %s54
      %p66 = scmp.eq.s32.totalorder %s23, 1
      %p67 = por %p65, %p66
      %p69 = scmp.ne.s32.totalorder %s54, %s68
      %p70 = scmp.eq.s32.totalorder %s23, 0
      %p71 = por %p69, %p70
      %s73 = sadd.s32 %s72, 1
      %p76 = scmp.eq.s32.totalorder %s17, 1
      %p77 = scmp.ne.s32.totalorder %s72, %s74
      %p78 = scmp.eq.s32.totalorder %s17, 0
      %p79 = por %p77, %p78
      %p80 = scmp.ne.s32.totalorder %s72, %s74
      %p81 = scmp.eq.s32.totalorder %s22, 1
      %p82 = por %p80, %p81
      %p83 = scmp.ne.s32.totalorder %s74, %s75
      %p84 = scmp.eq.s32.totalorder %s22, 0
      %p85 = por %p83, %p84
      %p86 = scmp.ne.s32.totalorder %s74, %s75
      %p87 = scmp.eq.s32.totalorder %s23, 1
      %p88 = por %p86, %p87
      %p90 = scmp.ne.s32.totalorder %s75, %s89
      %p91 = scmp.eq.s32.totalorder %s23, 0
      %p92 = por %p90, %p91
      %s93 = ssub.s32 %s17, %s24
      %p94 = scmp.eq.s32.totalorder %s93, 0
      %s96 = sadd.s32 %s95, 1
      %s97 = scalar_select %p94, %s95, %s96
      %p100 = pneg %p94
      %p101 = scmp.eq.s32.totalorder %s17, 1
      %p102 = por %p100, %p101
      %p103 = scmp.ne.s32.totalorder %s95, %s98
      %p104 = scmp.eq.s32.totalorder %s17, 0
      %p105 = por %p103, %p104
      %p106 = scmp.ne.s32.totalorder %s95, %s98
      %p107 = scmp.eq.s32.totalorder %s22, 1
      %p108 = por %p106, %p107
      %p109 = scmp.ne.s32.totalorder %s98, %s99
      %p110 = scmp.eq.s32.totalorder %s22, 0
      %p111 = por %p109, %p110
      %p112 = scmp.ne.s32.totalorder %s98, %s99
      %p113 = scmp.eq.s32.totalorder %s23, 1
      %p114 = por %p112, %p113
      %p116 = scmp.ne.s32.totalorder %s99, %s115
      %p117 = scmp.eq.s32.totalorder %s23, 0
      %p118 = por %p116, %p117
      %p119 = scmp.le.s32.totalorder 1, %s17
      %p120 = scmp.lt.s32.totalorder %s17, 3
      %p121 = pnand %p119, %p120
      %p122 = pneg %p121
      // Predicated region
      $region9: #{tpu_custom_call.1} parent=5 // pred_check
        _
      $region10: #{tpu_custom_call.1} parent=5 // pred_check_branch
        %124 = sbr.rel (%p121) target = $region12
      $region11: #{tpu_custom_call.1} parent=5 // pred_region
        %s125 = ssub.s32 %s17, 1
        // Predicated region
        $region13: #{tpu_custom_call.1} parent=11 // pred_check
          %p126 = pneg %p64
        $region14: #{tpu_custom_call.1} parent=11 // pred_check_branch
          %128 = sbr.rel (%p126) target = $region16
        $region15: #{tpu_custom_call.1} parent=11 // pred_region
          %130 = vsyncadd [#allocation7], 0
          %s132 = sshll.u32 %s1, 4
          %s133 = int_to_ptr.hbm [resolvable:$true] %s132
          %s134 = sshll.u32 [#allocation6], 4
          %s135 = int_to_ptr.vmem [resolvable:$true] %s134
          %137 = dma.hbm_to_vmem [thread:$0]  %s133, 64, %s135, [#allocation7]
        $region16: #{tpu_custom_call.1} parent=11 // pred_fallthru
          _
        // Predicated region
        $region17: #{tpu_custom_call.1} parent=11 // pred_check
          %p138 = pneg %p85
        $region18: #{tpu_custom_call.1} parent=11 // pred_check_branch
          %140 = sbr.rel (%p138) target = $region20
        $region19: #{tpu_custom_call.1} parent=11 // pred_region
          _
        $region20: #{tpu_custom_call.1} parent=11 // pred_fallthru
          _
      $region12: #{tpu_custom_call.1} parent=5 // pred_fallthru
        _
      %p141 = scmp.lt.s32.totalorder %s17, 2
      // Predicated region
      $region21: #{tpu_custom_call.1} parent=5 // pred_check
        %p142 = pneg %p141
      $region22: #{tpu_custom_call.1} parent=5 // pred_check_branch
        %144 = sbr.rel (%p142) target = $region24
      $region23: #{tpu_custom_call.1} parent=5 // pred_region
        // Predicated region
        $region25: #{tpu_custom_call.1} parent=23 // pred_check
          %p145 = pneg %p37
        $region26: #{tpu_custom_call.1} parent=23 // pred_check_branch
          %147 = sbr.rel (%p145) target = $region28
        $region27: #{tpu_custom_call.1} parent=23 // pred_region
          %s148 = sand.u32 %s27, 1
          %s149 = scalar_lea.sflag [#allocation4], %s148
          %s150 = sand.u32 %s27, 1
          %s151 = smul.addr %s150, 2176
          %s152 = scalar_lea.vmem [#allocation3], %s151
          %s153 = smul.u32 272, %s17
          %s154 = ssub.s32 529, %s153
          %p155 = scmp.lt.s32.totalorder %s154, 272
          %s156 = scalar_select %p155, %s154, 272
          %s157 = smul.u32 8, %s156
          %s158 = ssub.s32 2176, %s157
          %s159 = sshll.u32 %s158, 4
          %160 = vsyncadd %s149, %s159
          %p161 = scmp.ne.s32.totalorder 0, %s157
          %s162 = smul.addr %s153, 8
          %s163 = scalar_lea.hbm %s0, %s162
          %s164 = smul.u32 8, %s156
          %s165 = sshll.u32 %s163, 4
          %s166 = int_to_ptr.hbm [resolvable:$true] %s165
          %s167 = sshll.u32 %s152, 4
          %s168 = int_to_ptr.vmem [resolvable:$true] %s167
          %s169 = sshll.u32 %s164, 4
          %173 = dma.hbm_to_vmem [thread:$0]  (%p161), %s166, %s169, %s168, %s149, 128, 128, 8
        $region28: #{tpu_custom_call.1} parent=23 // pred_fallthru
          _
      $region24: #{tpu_custom_call.1} parent=5 // pred_fallthru
        _
      %p174 = scmp.le.s32.totalorder 1, %s17
      %p175 = scmp.lt.s32.totalorder %s17, 3
      %p176 = pnand %p174, %p175
      %p177 = pneg %p176
      // Predicated region
      $region29: #{tpu_custom_call.1} parent=5 // pred_check
        _
      $region30: #{tpu_custom_call.1} parent=5 // pred_check_branch
        %179 = sbr.rel (%p176) target = $region32
      $region31: #{tpu_custom_call.1} parent=5 // pred_region
        %s180 = ssub.s32 %s17, 1
        %s181 = sand.u32 %s30, 1
        %s182 = scalar_lea.sflag [#allocation4], %s181
        %s183 = sand.u32 %s30, 1
        %s184 = smul.addr %s183, 2176
        %s185 = scalar_lea.vmem [#allocation3], %s184
        // Predicated region
        $region33: #{tpu_custom_call.1} parent=31 // pred_check
          %p186 = pneg %p43
        $region34: #{tpu_custom_call.1} parent=31 // pred_check_branch
          %188 = sbr.rel (%p186) target = $region36
        $region35: #{tpu_custom_call.1} parent=31 // pred_region
          %190 = dma.done %s182, 34816
        $region36: #{tpu_custom_call.1} parent=31 // pred_fallthru
          _
        // Predicated region
        $region37: #{tpu_custom_call.1} parent=31 // pred_check
          %p191 = pneg %p64
        $region38: #{tpu_custom_call.1} parent=31 // pred_check_branch
          %193 = sbr.rel (%p191) target = $region40
        $region39: #{tpu_custom_call.1} parent=31 // pred_region
          %195 = dma.done [#allocation7], 64
        $region40: #{tpu_custom_call.1} parent=31 // pred_fallthru
          _
        %s196 = sand.u32 %s30, 1
        %s197 = scalar_lea.sflag [#allocation4], %s196
        %s198 = sand.u32 %s30, 1
        %s199 = smul.addr %s198, 2176
        %s200 = scalar_lea.vmem [#allocation3], %s199
        %p201 = pneg %p43
        %p202 = pneg %p40
        %p203 = pneg %p64
        %p204 = pneg %p61
        %p205 = pneg %p85
        %p206 = pneg %p82
        %p207 = pneg %p111
        %p208 = pneg %p108
        %s209 = sand.u32 %s98, 1
        %s210 = scalar_lea.sflag [#allocation5], %s209
        %s211 = sand.u32 %s98, 1
        %s212 = smul.addr %s211, 68
        %s213 = scalar_lea.vmem [#allocation8], %s212
        %s214 = smul.u32 272, %s22
        %s215 = ssub.s32 529, %s214
        %p216 = scmp.lt.s32.totalorder %s215, 272
        %s217 = scalar_select %p216, %s215, 272
        %s218 = smul.u32 8, %s217
        %s219 = smul.u32 17, %s22
        %v220 = vld [vmem:[#allocation6] sm:$0xf]
        %v221 = vld [vmem:[%s185] sm:$0xff]
        %v222 = vld [vmem:[%s185 + $0x8] sm:$0xff]
        %v223 = vld [vmem:[%s185 + $0x10] sm:$0xff]
        %v224 = vld [vmem:[%s185 + $0x18] sm:$0xff]
        %v225 = vld [vmem:[%s185 + $0x20] sm:$0xff]
        %v226 = vld [vmem:[%s185 + $0x28] sm:$0xff]
        %v227 = vld [vmem:[%s185 + $0x30] sm:$0xff]
        %v228 = vld [vmem:[%s185 + $0x38] sm:$0xff]
        %v229 = vld [vmem:[%s185 + $0x40] sm:$0xff]
        %v230 = vld [vmem:[%s185 + $0x48] sm:$0xff]
        %v231 = vld [vmem:[%s185 + $0x50] sm:$0xff]
        %v232 = vld [vmem:[%s185 + $0x58] sm:$0xff]
        %v233 = vld [vmem:[%s185 + $0x60] sm:$0xff]
        %v234 = vld [vmem:[%s185 + $0x68] sm:$0xff]
        %v235 = vld [vmem:[%s185 + $0x70] sm:$0xff]
        %v236 = vld [vmem:[%s185 + $0x78] sm:$0xff]
        %v237 = vld [vmem:[%s185 + $0x80] sm:$0xff]
        %v238 = vld [vmem:[%s185 + $0x88] sm:$0xff]
        %v239 = vld [vmem:[%s185 + $0x90] sm:$0xff]
        %v240 = vld [vmem:[%s185 + $0x98] sm:$0xff]
        %v241 = vld [vmem:[%s185 + $0xa0] sm:$0xff]
        %v242 = vld [vmem:[%s185 + $0xa8] sm:$0xff]
        %v243 = vld [vmem:[%s185 + $0xb0] sm:$0xff]
        %v244 = vld [vmem:[%s185 + $0xb8] sm:$0xff]
        %v245 = vld [vmem:[%s185 + $0xc0] sm:$0xff]
        %v246 = vld [vmem:[%s185 + $0xc8] sm:$0xff]
        %v247 = vld [vmem:[%s185 + $0xd0] sm:$0xff]
        %v248 = vld [vmem:[%s185 + $0xd8] sm:$0xff]
        %v249 = vld [vmem:[%s185 + $0xe0] sm:$0xff]
        %v250 = vld [vmem:[%s185 + $0xe8] sm:$0xff]
        %v251 = vld [vmem:[%s185 + $0xf0] sm:$0xff]
        %v252 = vld [vmem:[%s185 + $0xf8] sm:$0xff]
        %v253 = vld [vmem:[%s185 + $0x100] sm:$0xff]
        %v254 = vld [vmem:[%s185 + $0x108] sm:$0xff]
        %v255 = vld [vmem:[%s185 + $0x110] sm:$0xff]
        %v256 = vld [vmem:[%s185 + $0x118] sm:$0xff]
        %v257 = vld [vmem:[%s185 + $0x120] sm:$0xff]
        %v258 = vld [vmem:[%s185 + $0x128] sm:$0xff]
        %v259 = vld [vmem:[%s185 + $0x130] sm:$0xff]
        %v260 = vld [vmem:[%s185 + $0x138] sm:$0xff]
        %v261 = vld [vmem:[%s185 + $0x140] sm:$0xff]
        %v262 = vld [vmem:[%s185 + $0x148] sm:$0xff]
        %v263 = vld [vmem:[%s185 + $0x150] sm:$0xff]
        %v264 = vld [vmem:[%s185 + $0x158] sm:$0xff]
        %v265 = vld [vmem:[%s185 + $0x160] sm:$0xff]
        %v266 = vld [vmem:[%s185 + $0x168] sm:$0xff]
        %v267 = vld [vmem:[%s185 + $0x170] sm:$0xff]
        %v268 = vld [vmem:[%s185 + $0x178] sm:$0xff]
        %v269 = vld [vmem:[%s185 + $0x180] sm:$0xff]
        %v270 = vld [vmem:[%s185 + $0x188] sm:$0xff]
        %v271 = vld [vmem:[%s185 + $0x190] sm:$0xff]
        %v272 = vld [vmem:[%s185 + $0x198] sm:$0xff]
        %v273 = vld [vmem:[%s185 + $0x1a0] sm:$0xff]
        %v274 = vld [vmem:[%s185 + $0x1a8] sm:$0xff]
        %v275 = vld [vmem:[%s185 + $0x1b0] sm:$0xff]
        %v276 = vld [vmem:[%s185 + $0x1b8] sm:$0xff]
        %v277 = vld [vmem:[%s185 + $0x1c0] sm:$0xff]
        %v278 = vld [vmem:[%s185 + $0x1c8] sm:$0xff]
        %v279 = vld [vmem:[%s185 + $0x1d0] sm:$0xff]
        %v280 = vld [vmem:[%s185 + $0x1d8] sm:$0xff]
        %v281 = vld [vmem:[%s185 + $0x1e0] sm:$0xff]
        %v282 = vld [vmem:[%s185 + $0x1e8] sm:$0xff]
        %v283 = vld [vmem:[%s185 + $0x1f0] sm:$0xff]
        %v284 = vld [vmem:[%s185 + $0x1f8] sm:$0xff]
        %v285 = vld [vmem:[%s185 + $0x200] sm:$0xff]
        %v286 = vld [vmem:[%s185 + $0x208] sm:$0xff]
        %v287 = vld [vmem:[%s185 + $0x210] sm:$0xff]
        %v288 = vld [vmem:[%s185 + $0x218] sm:$0xff]
        %v289 = vld [vmem:[%s185 + $0x220] sm:$0xff]
        %v290 = vld [vmem:[%s185 + $0x228] sm:$0xff]
        %v291 = vld [vmem:[%s185 + $0x230] sm:$0xff]
        %v292 = vld [vmem:[%s185 + $0x238] sm:$0xff]
        %v293 = vld [vmem:[%s185 + $0x240] sm:$0xff]
        %v294 = vld [vmem:[%s185 + $0x248] sm:$0xff]
        %v295 = vld [vmem:[%s185 + $0x250] sm:$0xff]
        %v296 = vld [vmem:[%s185 + $0x258] sm:$0xff]
        %v297 = vld [vmem:[%s185 + $0x260] sm:$0xff]
        %v298 = vld [vmem:[%s185 + $0x268] sm:$0xff]
        %v299 = vld [vmem:[%s185 + $0x270] sm:$0xff]
        %v300 = vld [vmem:[%s185 + $0x278] sm:$0xff]
        %v301 = vld [vmem:[%s185 + $0x280] sm:$0xff]
        %v302 = vld [vmem:[%s185 + $0x288] sm:$0xff]
        %v303 = vld [vmem:[%s185 + $0x290] sm:$0xff]
        %v304 = vld [vmem:[%s185 + $0x298] sm:$0xff]
        %v305 = vld [vmem:[%s185 + $0x2a0] sm:$0xff]
        %v306 = vld [vmem:[%s185 + $0x2a8] sm:$0xff]
        %v307 = vld [vmem:[%s185 + $0x2b0] sm:$0xff]
        %v308 = vld [vmem:[%s185 + $0x2b8] sm:$0xff]
        %v309 = vld [vmem:[%s185 + $0x2c0] sm:$0xff]
        %v310 = vld [vmem:[%s185 + $0x2c8] sm:$0xff]
        %v311 = vld [vmem:[%s185 + $0x2d0] sm:$0xff]
        %v312 = vld [vmem:[%s185 + $0x2d8] sm:$0xff]
        %v313 = vld [vmem:[%s185 + $0x2e0] sm:$0xff]
        %v314 = vld [vmem:[%s185 + $0x2e8] sm:$0xff]
        %v315 = vld [vmem:[%s185 + $0x2f0] sm:$0xff]
        %v316 = vld [vmem:[%s185 + $0x2f8] sm:$0xff]
        %v317 = vld [vmem:[%s185 + $0x300] sm:$0xff]
        %v318 = vld [vmem:[%s185 + $0x308] sm:$0xff]
        %v319 = vld [vmem:[%s185 + $0x310] sm:$0xff]
        %v320 = vld [vmem:[%s185 + $0x318] sm:$0xff]
        %v321 = vld [vmem:[%s185 + $0x320] sm:$0xff]
        %v322 = vld [vmem:[%s185 + $0x328] sm:$0xff]
        %v323 = vld [vmem:[%s185 + $0x330] sm:$0xff]
        %v324 = vld [vmem:[%s185 + $0x338] sm:$0xff]
        %v325 = vld [vmem:[%s185 + $0x340] sm:$0xff]
        %v326 = vld [vmem:[%s185 + $0x348] sm:$0xff]
        %v327 = vld [vmem:[%s185 + $0x350] sm:$0xff]
        %v328 = vld [vmem:[%s185 + $0x358] sm:$0xff]
        %v329 = vld [vmem:[%s185 + $0x360] sm:$0xff]
        %v330 = vld [vmem:[%s185 + $0x368] sm:$0xff]
        %v331 = vld [vmem:[%s185 + $0x370] sm:$0xff]
        %v332 = vld [vmem:[%s185 + $0x378] sm:$0xff]
        %v333 = vld [vmem:[%s185 + $0x380] sm:$0xff]
        %v334 = vld [vmem:[%s185 + $0x388] sm:$0xff]
        %v335 = vld [vmem:[%s185 + $0x390] sm:$0xff]
        %v336 = vld [vmem:[%s185 + $0x398] sm:$0xff]
        %v337 = vld [vmem:[%s185 + $0x3a0] sm:$0xff]
        %v338 = vld [vmem:[%s185 + $0x3a8] sm:$0xff]
        %v339 = vld [vmem:[%s185 + $0x3b0] sm:$0xff]
        %v340 = vld [vmem:[%s185 + $0x3b8] sm:$0xff]
        %v341 = vld [vmem:[%s185 + $0x3c0] sm:$0xff]
        %v342 = vld [vmem:[%s185 + $0x3c8] sm:$0xff]
        %v343 = vld [vmem:[%s185 + $0x3d0] sm:$0xff]
        %v344 = vld [vmem:[%s185 + $0x3d8] sm:$0xff]
        %v345 = vld [vmem:[%s185 + $0x3e0] sm:$0xff]
        %v346 = vld [vmem:[%s185 + $0x3e8] sm:$0xff]
        %v347 = vld [vmem:[%s185 + $0x3f0] sm:$0xff]
        %v348 = vld [vmem:[%s185 + $0x3f8] sm:$0xff]
        %v349 = vld [vmem:[%s185 + $0x400] sm:$0xff]
        %v350 = vld [vmem:[%s185 + $0x408] sm:$0xff]
        %v351 = vld [vmem:[%s185 + $0x410] sm:$0xff]
        %v352 = vld [vmem:[%s185 + $0x418] sm:$0xff]
        %v353 = vld [vmem:[%s185 + $0x420] sm:$0xff]
        %v354 = vld [vmem:[%s185 + $0x428] sm:$0xff]
        %v355 = vld [vmem:[%s185 + $0x430] sm:$0xff]
        %v356 = vld [vmem:[%s185 + $0x438] sm:$0xff]
        %v357 = vld [vmem:[%s185 + $0x440] sm:$0xff]
        %v358 = vld [vmem:[%s185 + $0x448] sm:$0xff]
        %v359 = vld [vmem:[%s185 + $0x450] sm:$0xff]
        %v360 = vld [vmem:[%s185 + $0x458] sm:$0xff]
        %v361 = vld [vmem:[%s185 + $0x460] sm:$0xff]
        %v362 = vld [vmem:[%s185 + $0x468] sm:$0xff]
        %v363 = vld [vmem:[%s185 + $0x470] sm:$0xff]
        %v364 = vld [vmem:[%s185 + $0x478] sm:$0xff]
        %v365 = vld [vmem:[%s185 + $0x480] sm:$0xff]
        %v366 = vld [vmem:[%s185 + $0x488] sm:$0xff]
        %v367 = vld [vmem:[%s185 + $0x490] sm:$0xff]
        %v368 = vld [vmem:[%s185 + $0x498] sm:$0xff]
        %v369 = vld [vmem:[%s185 + $0x4a0] sm:$0xff]
        %v370 = vld [vmem:[%s185 + $0x4a8] sm:$0xff]
        %v371 = vld [vmem:[%s185 + $0x4b0] sm:$0xff]
        %v372 = vld [vmem:[%s185 + $0x4b8] sm:$0xff]
        %v373 = vld [vmem:[%s185 + $0x4c0] sm:$0xff]
        %v374 = vld [vmem:[%s185 + $0x4c8] sm:$0xff]
        %v375 = vld [vmem:[%s185 + $0x4d0] sm:$0xff]
        %v376 = vld [vmem:[%s185 + $0x4d8] sm:$0xff]
        %v377 = vld [vmem:[%s185 + $0x4e0] sm:$0xff]
        %v378 = vld [vmem:[%s185 + $0x4e8] sm:$0xff]
        %v379 = vld [vmem:[%s185 + $0x4f0] sm:$0xff]
        %v380 = vld [vmem:[%s185 + $0x4f8] sm:$0xff]
        %v381 = vld [vmem:[%s185 + $0x500] sm:$0xff]
        %v382 = vld [vmem:[%s185 + $0x508] sm:$0xff]
        %v383 = vld [vmem:[%s185 + $0x510] sm:$0xff]
        %v384 = vld [vmem:[%s185 + $0x518] sm:$0xff]
        %v385 = vld [vmem:[%s185 + $0x520] sm:$0xff]
        %v386 = vld [vmem:[%s185 + $0x528] sm:$0xff]
        %v387 = vld [vmem:[%s185 + $0x530] sm:$0xff]
        %v388 = vld [vmem:[%s185 + $0x538] sm:$0xff]
        %v389 = vld [vmem:[%s185 + $0x540] sm:$0xff]
        %v390 = vld [vmem:[%s185 + $0x548] sm:$0xff]
        %v391 = vld [vmem:[%s185 + $0x550] sm:$0xff]
        %v392 = vld [vmem:[%s185 + $0x558] sm:$0xff]
        %v393 = vld [vmem:[%s185 + $0x560] sm:$0xff]
        %v394 = vld [vmem:[%s185 + $0x568] sm:$0xff]
        %v395 = vld [vmem:[%s185 + $0x570] sm:$0xff]
        %v396 = vld [vmem:[%s185 + $0x578] sm:$0xff]
        %v397 = vld [vmem:[%s185 + $0x580] sm:$0xff]
        %v398 = vld [vmem:[%s185 + $0x588] sm:$0xff]
        %v399 = vld [vmem:[%s185 + $0x590] sm:$0xff]
        %v400 = vld [vmem:[%s185 + $0x598] sm:$0xff]
        %v401 = vld [vmem:[%s185 + $0x5a0] sm:$0xff]
        %v402 = vld [vmem:[%s185 + $0x5a8] sm:$0xff]
        %v403 = vld [vmem:[%s185 + $0x5b0] sm:$0xff]
        %v404 = vld [vmem:[%s185 + $0x5b8] sm:$0xff]
        %v405 = vld [vmem:[%s185 + $0x5c0] sm:$0xff]
        %v406 = vld [vmem:[%s185 + $0x5c8] sm:$0xff]
        %v407 = vld [vmem:[%s185 + $0x5d0] sm:$0xff]
        %v408 = vld [vmem:[%s185 + $0x5d8] sm:$0xff]
        %v409 = vld [vmem:[%s185 + $0x5e0] sm:$0xff]
        %v410 = vld [vmem:[%s185 + $0x5e8] sm:$0xff]
        %v411 = vld [vmem:[%s185 + $0x5f0] sm:$0xff]
        %v412 = vld [vmem:[%s185 + $0x5f8] sm:$0xff]
        %v413 = vld [vmem:[%s185 + $0x600] sm:$0xff]
        %v414 = vld [vmem:[%s185 + $0x608] sm:$0xff]
        %v415 = vld [vmem:[%s185 + $0x610] sm:$0xff]
        %v416 = vld [vmem:[%s185 + $0x618] sm:$0xff]
        %v417 = vld [vmem:[%s185 + $0x620] sm:$0xff]
        %v418 = vld [vmem:[%s185 + $0x628] sm:$0xff]
        %v419 = vld [vmem:[%s185 + $0x630] sm:$0xff]
        %v420 = vld [vmem:[%s185 + $0x638] sm:$0xff]
        %v421 = vld [vmem:[%s185 + $0x640] sm:$0xff]
        %v422 = vld [vmem:[%s185 + $0x648] sm:$0xff]
        %v423 = vld [vmem:[%s185 + $0x650] sm:$0xff]
        %v424 = vld [vmem:[%s185 + $0x658] sm:$0xff]
        %v425 = vld [vmem:[%s185 + $0x660] sm:$0xff]
        %v426 = vld [vmem:[%s185 + $0x668] sm:$0xff]
        %v427 = vld [vmem:[%s185 + $0x670] sm:$0xff]
        %v428 = vld [vmem:[%s185 + $0x678] sm:$0xff]
        %v429 = vld [vmem:[%s185 + $0x680] sm:$0xff]
        %v430 = vld [vmem:[%s185 + $0x688] sm:$0xff]
        %v431 = vld [vmem:[%s185 + $0x690] sm:$0xff]
        %v432 = vld [vmem:[%s185 + $0x698] sm:$0xff]
        %v433 = vld [vmem:[%s185 + $0x6a0] sm:$0xff]
        %v434 = vld [vmem:[%s185 + $0x6a8] sm:$0xff]
        %v435 = vld [vmem:[%s185 + $0x6b0] sm:$0xff]
        %v436 = vld [vmem:[%s185 + $0x6b8] sm:$0xff]
        %v437 = vld [vmem:[%s185 + $0x6c0] sm:$0xff]
        %v438 = vld [vmem:[%s185 + $0x6c8] sm:$0xff]
        %v439 = vld [vmem:[%s185 + $0x6d0] sm:$0xff]
        %v440 = vld [vmem:[%s185 + $0x6d8] sm:$0xff]
        %v441 = vld [vmem:[%s185 + $0x6e0] sm:$0xff]
        %v442 = vld [vmem:[%s185 + $0x6e8] sm:$0xff]
        %v443 = vld [vmem:[%s185 + $0x6f0] sm:$0xff]
        %v444 = vld [vmem:[%s185 + $0x6f8] sm:$0xff]
        %v445 = vld [vmem:[%s185 + $0x700] sm:$0xff]
        %v446 = vld [vmem:[%s185 + $0x708] sm:$0xff]
        %v447 = vld [vmem:[%s185 + $0x710] sm:$0xff]
        %v448 = vld [vmem:[%s185 + $0x718] sm:$0xff]
        %v449 = vld [vmem:[%s185 + $0x720] sm:$0xff]
        %v450 = vld [vmem:[%s185 + $0x728] sm:$0xff]
        %v451 = vld [vmem:[%s185 + $0x730] sm:$0xff]
        %v452 = vld [vmem:[%s185 + $0x738] sm:$0xff]
        %v453 = vld [vmem:[%s185 + $0x740] sm:$0xff]
        %v454 = vld [vmem:[%s185 + $0x748] sm:$0xff]
        %v455 = vld [vmem:[%s185 + $0x750] sm:$0xff]
        %v456 = vld [vmem:[%s185 + $0x758] sm:$0xff]
        %v457 = vld [vmem:[%s185 + $0x760] sm:$0xff]
        %v458 = vld [vmem:[%s185 + $0x768] sm:$0xff]
        %v459 = vld [vmem:[%s185 + $0x770] sm:$0xff]
        %v460 = vld [vmem:[%s185 + $0x778] sm:$0xff]
        %v461 = vld [vmem:[%s185 + $0x780] sm:$0xff]
        %v462 = vld [vmem:[%s185 + $0x788] sm:$0xff]
        %v463 = vld [vmem:[%s185 + $0x790] sm:$0xff]
        %v464 = vld [vmem:[%s185 + $0x798] sm:$0xff]
        %v465 = vld [vmem:[%s185 + $0x7a0] sm:$0xff]
        %v466 = vld [vmem:[%s185 + $0x7a8] sm:$0xff]
        %v467 = vld [vmem:[%s185 + $0x7b0] sm:$0xff]
        %v468 = vld [vmem:[%s185 + $0x7b8] sm:$0xff]
        %v469 = vld [vmem:[%s185 + $0x7c0] sm:$0xff]
        %v470 = vld [vmem:[%s185 + $0x7c8] sm:$0xff]
        %v471 = vld [vmem:[%s185 + $0x7d0] sm:$0xff]
        %v472 = vld [vmem:[%s185 + $0x7d8] sm:$0xff]
        %v473 = vld [vmem:[%s185 + $0x7e0] sm:$0xff]
        %v474 = vld [vmem:[%s185 + $0x7e8] sm:$0xff]
        %v475 = vld [vmem:[%s185 + $0x7f0] sm:$0xff]
        %v476 = vld [vmem:[%s185 + $0x7f8] sm:$0xff]
        %v477 = vld [vmem:[%s185 + $0x800] sm:$0xff]
        %v478 = vld [vmem:[%s185 + $0x808] sm:$0xff]
        %v479 = vld [vmem:[%s185 + $0x810] sm:$0xff]
        %v480 = vld [vmem:[%s185 + $0x818] sm:$0xff]
        %v481 = vld [vmem:[%s185 + $0x820] sm:$0xff]
        %v482 = vld [vmem:[%s185 + $0x828] sm:$0xff]
        %v483 = vld [vmem:[%s185 + $0x830] sm:$0xff]
        %v484 = vld [vmem:[%s185 + $0x838] sm:$0xff]
        %v485 = vld [vmem:[%s185 + $0x840] sm:$0xff]
        %v486 = vld [vmem:[%s185 + $0x848] sm:$0xff]
        %v487 = vld [vmem:[%s185 + $0x850] sm:$0xff]
        %v488 = vld [vmem:[%s185 + $0x858] sm:$0xff]
        %v489 = vld [vmem:[%s185 + $0x860] sm:$0xff]
        %v490 = vld [vmem:[%s185 + $0x868] sm:$0xff]
        %v491 = vld [vmem:[%s185 + $0x870] sm:$0xff]
        %v492 = vld [vmem:[%s185 + $0x878] sm:$0xff]
        %s493 = sld [smem:[#allocation2]]
        %v494 = vstv %s493
        %495 = vmatpush.xpose.msra.mxu0 %v236
        %496 = vmatpush.xpose.msra.mxu0 %v235
        %497 = vmatpush.xpose.msra.mxu0 %v234
        %498 = vmatpush.xpose.msra.mxu0 %v233
        %499 = vmatpush.xpose.msra.mxu0 %v232
        %500 = vmatpush.xpose.msra.mxu0 %v231
        %501 = vmatpush.xpose.msra.mxu0 %v230
        %502 = vmatpush.xpose.msra.mxu0 %v229
        %503 = vmatpush.xpose.msra.mxu0 %v228
        %504 = vmatpush.xpose.msra.mxu0 %v227
        %505 = vmatpush.xpose.msra.mxu0 %v226
        %506 = vmatpush.xpose.msra.mxu0 %v225
        %507 = vmatpush.xpose.msra.mxu0 %v224
        %508 = vmatpush.xpose.msra.mxu0 %v223
        %509 = vmatpush.xpose.msra.mxu0 %v222
        %510 = vmatpush.xpose.msra.mxu0 %v221
        %511 = vmatmul.f32.gmra.mxu0 %v220
        %v512 = vpop.f32.mrf.mxu0
        %v513 = vadd.f32 %v494, %v512
        %514 = vdwg.mxu0
        %515 = vmatpush.xpose.msra.mxu0 %v252
        %516 = vmatpush.xpose.msra.mxu0 %v251
        %517 = vmatpush.xpose.msra.mxu0 %v250
        %518 = vmatpush.xpose.msra.mxu0 %v249
        %519 = vmatpush.xpose.msra.mxu0 %v248
        %520 = vmatpush.xpose.msra.mxu0 %v247
        %521 = vmatpush.xpose.msra.mxu0 %v246
        %522 = vmatpush.xpose.msra.mxu0 %v245
        %523 = vmatpush.xpose.msra.mxu0 %v244
        %524 = vmatpush.xpose.msra.mxu0 %v243
        %525 = vmatpush.xpose.msra.mxu0 %v242
        %526 = vmatpush.xpose.msra.mxu0 %v241
        %527 = vmatpush.xpose.msra.mxu0 %v240
        %528 = vmatpush.xpose.msra.mxu0 %v239
        %529 = vmatpush.xpose.msra.mxu0 %v238
        %530 = vmatpush.xpose.msra.mxu0 %v237
        %531 = vmatmul.f32.gmra.mxu0 %v220
        %v532 = vpop.f32.mrf.mxu0
        %v533 = vadd.f32 %v494, %v532
        %534 = vdwg.mxu0
        %535 = vmatpush.xpose.msra.mxu0 %v268
        %536 = vmatpush.xpose.msra.mxu0 %v267
        %537 = vmatpush.xpose.msra.mxu0 %v266
        %538 = vmatpush.xpose.msra.mxu0 %v265
        %539 = vmatpush.xpose.msra.mxu0 %v264
        %540 = vmatpush.xpose.msra.mxu0 %v263
        %541 = vmatpush.xpose.msra.mxu0 %v262
        %542 = vmatpush.xpose.msra.mxu0 %v261
        %543 = vmatpush.xpose.msra.mxu0 %v260
        %544 = vmatpush.xpose.msra.mxu0 %v259
        %545 = vmatpush.xpose.msra.mxu0 %v258
        %546 = vmatpush.xpose.msra.mxu0 %v257
        %547 = vmatpush.xpose.msra.mxu0 %v256
        %548 = vmatpush.xpose.msra.mxu0 %v255
        %549 = vmatpush.xpose.msra.mxu0 %v254
        %550 = vmatpush.xpose.msra.mxu0 %v253
        %551 = vmatmul.f32.gmra.mxu0 %v220
        %v552 = vpop.f32.mrf.mxu0
        %v553 = vadd.f32 %v494, %v552
        %554 = vdwg.mxu0
        %555 = vmatpush.xpose.msra.mxu0 %v284
        %556 = vmatpush.xpose.msra.mxu0 %v283
        %557 = vmatpush.xpose.msra.mxu0 %v282
        %558 = vmatpush.xpose.msra.mxu0 %v281
        %559 = vmatpush.xpose.msra.mxu0 %v280
        %560 = vmatpush.xpose.msra.mxu0 %v279
        %561 = vmatpush.xpose.msra.mxu0 %v278
        %562 = vmatpush.xpose.msra.mxu0 %v277
        %563 = vmatpush.xpose.msra.mxu0 %v276
        %564 = vmatpush.xpose.msra.mxu0 %v275
        %565 = vmatpush.xpose.msra.mxu0 %v274
        %566 = vmatpush.xpose.msra.mxu0 %v273
        %567 = vmatpush.xpose.msra.mxu0 %v272
        %568 = vmatpush.xpose.msra.mxu0 %v271
        %569 = vmatpush.xpose.msra.mxu0 %v270
        %570 = vmatpush.xpose.msra.mxu0 %v269
        %571 = vmatmul.f32.gmra.mxu0 %v220
        %v572 = vpop.f32.mrf.mxu0
        %v573 = vadd.f32 %v494, %v572
        %574 = vdwg.mxu0
        %575 = vmatpush.xpose.msra.mxu0 %v300
        %576 = vmatpush.xpose.msra.mxu0 %v299
        %577 = vmatpush.xpose.msra.mxu0 %v298
        %578 = vmatpush.xpose.msra.mxu0 %v297
        %579 = vmatpush.xpose.msra.mxu0 %v296
        %580 = vmatpush.xpose.msra.mxu0 %v295
        %581 = vmatpush.xpose.msra.mxu0 %v294
        %582 = vmatpush.xpose.msra.mxu0 %v293
        %583 = vmatpush.xpose.msra.mxu0 %v292
        %584 = vmatpush.xpose.msra.mxu0 %v291
        %585 = vmatpush.xpose.msra.mxu0 %v290
        %586 = vmatpush.xpose.msra.mxu0 %v289
        %587 = vmatpush.xpose.msra.mxu0 %v288
        %588 = vmatpush.xpose.msra.mxu0 %v287
        %589 = vmatpush.xpose.msra.mxu0 %v286
        %590 = vmatpush.xpose.msra.mxu0 %v285
        %591 = vmatmul.f32.gmra.mxu0 %v220
        %v592 = vpop.f32.mrf.mxu0
        %v593 = vadd.f32 %v494, %v592
        %594 = vdwg.mxu0
        %595 = vmatpush.xpose.msra.mxu0 %v316
        %596 = vmatpush.xpose.msra.mxu0 %v315
        %597 = vmatpush.xpose.msra.mxu0 %v314
        %598 = vmatpush.xpose.msra.mxu0 %v313
        %599 = vmatpush.xpose.msra.mxu0 %v312
        %600 = vmatpush.xpose.msra.mxu0 %v311
        %601 = vmatpush.xpose.msra.mxu0 %v310
        %602 = vmatpush.xpose.msra.mxu0 %v309
        %603 = vmatpush.xpose.msra.mxu0 %v308
        %604 = vmatpush.xpose.msra.mxu0 %v307
        %605 = vmatpush.xpose.msra.mxu0 %v306
        %606 = vmatpush.xpose.msra.mxu0 %v305
        %607 = vmatpush.xpose.msra.mxu0 %v304
        %608 = vmatpush.xpose.msra.mxu0 %v303
        %609 = vmatpush.xpose.msra.mxu0 %v302
        %610 = vmatpush.xpose.msra.mxu0 %v301
        %611 = vmatmul.f32.gmra.mxu0 %v220
        %v612 = vpop.f32.mrf.mxu0
        %v613 = vadd.f32 %v494, %v612
        %614 = vdwg.mxu0
        %615 = vmatpush.xpose.msra.mxu0 %v332
        %616 = vmatpush.xpose.msra.mxu0 %v331
        %617 = vmatpush.xpose.msra.mxu0 %v330
        %618 = vmatpush.xpose.msra.mxu0 %v329
        %619 = vmatpush.xpose.msra.mxu0 %v328
        %620 = vmatpush.xpose.msra.mxu0 %v327
        %621 = vmatpush.xpose.msra.mxu0 %v326
        %622 = vmatpush.xpose.msra.mxu0 %v325
        %623 = vmatpush.xpose.msra.mxu0 %v324
        %624 = vmatpush.xpose.msra.mxu0 %v323
        %625 = vmatpush.xpose.msra.mxu0 %v322
        %626 = vmatpush.xpose.msra.mxu0 %v321
        %627 = vmatpush.xpose.msra.mxu0 %v320
        %628 = vmatpush.xpose.msra.mxu0 %v319
        %629 = vmatpush.xpose.msra.mxu0 %v318
        %630 = vmatpush.xpose.msra.mxu0 %v317
        %631 = vmatmul.f32.gmra.mxu0 %v220
        %v632 = vpop.f32.mrf.mxu0
        %v633 = vadd.f32 %v494, %v632
        %634 = vdwg.mxu0
        %635 = vmatpush.xpose.msra.mxu0 %v348
        %636 = vmatpush.xpose.msra.mxu0 %v347
        %637 = vmatpush.xpose.msra.mxu0 %v346
        %638 = vmatpush.xpose.msra.mxu0 %v345
        %639 = vmatpush.xpose.msra.mxu0 %v344
        %640 = vmatpush.xpose.msra.mxu0 %v343
        %641 = vmatpush.xpose.msra.mxu0 %v342
        %642 = vmatpush.xpose.msra.mxu0 %v341
        %643 = vmatpush.xpose.msra.mxu0 %v340
        %644 = vmatpush.xpose.msra.mxu0 %v339
        %645 = vmatpush.xpose.msra.mxu0 %v338
        %646 = vmatpush.xpose.msra.mxu0 %v337
        %647 = vmatpush.xpose.msra.mxu0 %v336
        %648 = vmatpush.xpose.msra.mxu0 %v335
        %649 = vmatpush.xpose.msra.mxu0 %v334
        %650 = vmatpush.xpose.msra.mxu0 %v333
        %651 = vmatmul.f32.gmra.mxu0 %v220
        %v652 = vpop.f32.mrf.mxu0
        %v653 = vadd.f32 %v494, %v652
        %654 = vdwg.mxu0
        %655 = vmatpush.xpose.msra.mxu0 %v364
        %656 = vmatpush.xpose.msra.mxu0 %v363
        %657 = vmatpush.xpose.msra.mxu0 %v362
        %658 = vmatpush.xpose.msra.mxu0 %v361
        %659 = vmatpush.xpose.msra.mxu0 %v360
        %660 = vmatpush.xpose.msra.mxu0 %v359
        %661 = vmatpush.xpose.msra.mxu0 %v358
        %662 = vmatpush.xpose.msra.mxu0 %v357
        %663 = vmatpush.xpose.msra.mxu0 %v356
        %664 = vmatpush.xpose.msra.mxu0 %v355
        %665 = vmatpush.xpose.msra.mxu0 %v354
        %666 = vmatpush.xpose.msra.mxu0 %v353
        %667 = vmatpush.xpose.msra.mxu0 %v352
        %668 = vmatpush.xpose.msra.mxu0 %v351
        %669 = vmatpush.xpose.msra.mxu0 %v350
        %670 = vmatpush.xpose.msra.mxu0 %v349
        %671 = vmatmul.f32.gmra.mxu0 %v220
        %v672 = vpop.f32.mrf.mxu0
        %v673 = vadd.f32 %v494, %v672
        %674 = vdwg.mxu0
        %675 = vmatpush.xpose.msra.mxu0 %v380
        %676 = vmatpush.xpose.msra.mxu0 %v379
        %677 = vmatpush.xpose.msra.mxu0 %v378
        %678 = vmatpush.xpose.msra.mxu0 %v377
        %679 = vmatpush.xpose.msra.mxu0 %v376
        %680 = vmatpush.xpose.msra.mxu0 %v375
        %681 = vmatpush.xpose.msra.mxu0 %v374
        %682 = vmatpush.xpose.msra.mxu0 %v373
        %683 = vmatpush.xpose.msra.mxu0 %v372
        %684 = vmatpush.xpose.msra.mxu0 %v371
        %685 = vmatpush.xpose.msra.mxu0 %v370
        %686 = vmatpush.xpose.msra.mxu0 %v369
        %687 = vmatpush.xpose.msra.mxu0 %v368
        %688 = vmatpush.xpose.msra.mxu0 %v367
        %689 = vmatpush.xpose.msra.mxu0 %v366
        %690 = vmatpush.xpose.msra.mxu0 %v365
        %691 = vmatmul.f32.gmra.mxu0 %v220
        %v692 = vpop.f32.mrf.mxu0
        %v693 = vadd.f32 %v494, %v692
        %694 = vdwg.mxu0
        %695 = vmatpush.xpose.msra.mxu0 %v396
        %696 = vmatpush.xpose.msra.mxu0 %v395
        %697 = vmatpush.xpose.msra.mxu0 %v394
        %698 = vmatpush.xpose.msra.mxu0 %v393
        %699 = vmatpush.xpose.msra.mxu0 %v392
        %700 = vmatpush.xpose.msra.mxu0 %v391
        %701 = vmatpush.xpose.msra.mxu0 %v390
        %702 = vmatpush.xpose.msra.mxu0 %v389
        %703 = vmatpush.xpose.msra.mxu0 %v388
        %704 = vmatpush.xpose.msra.mxu0 %v387
        %705 = vmatpush.xpose.msra.mxu0 %v386
        %706 = vmatpush.xpose.msra.mxu0 %v385
        %707 = vmatpush.xpose.msra.mxu0 %v384
        %708 = vmatpush.xpose.msra.mxu0 %v383
        %709 = vmatpush.xpose.msra.mxu0 %v382
        %710 = vmatpush.xpose.msra.mxu0 %v381
        %711 = vmatmul.f32.gmra.mxu0 %v220
        %v712 = vpop.f32.mrf.mxu0
        %v713 = vadd.f32 %v494, %v712
        %714 = vdwg.mxu0
        %715 = vmatpush.xpose.msra.mxu0 %v412
        %716 = vmatpush.xpose.msra.mxu0 %v411
        %717 = vmatpush.xpose.msra.mxu0 %v410
        %718 = vmatpush.xpose.msra.mxu0 %v409
        %719 = vmatpush.xpose.msra.mxu0 %v408
        %720 = vmatpush.xpose.msra.mxu0 %v407
        %721 = vmatpush.xpose.msra.mxu0 %v406
        %722 = vmatpush.xpose.msra.mxu0 %v405
        %723 = vmatpush.xpose.msra.mxu0 %v404
        %724 = vmatpush.xpose.msra.mxu0 %v403
        %725 = vmatpush.xpose.msra.mxu0 %v402
        %726 = vmatpush.xpose.msra.mxu0 %v401
        %727 = vmatpush.xpose.msra.mxu0 %v400
        %728 = vmatpush.xpose.msra.mxu0 %v399
        %729 = vmatpush.xpose.msra.mxu0 %v398
        %730 = vmatpush.xpose.msra.mxu0 %v397
        %731 = vmatmul.f32.gmra.mxu0 %v220
        %v732 = vpop.f32.mrf.mxu0
        %v733 = vadd.f32 %v494, %v732
        %734 = vdwg.mxu0
        %735 = vmatpush.xpose.msra.mxu0 %v428
        %736 = vmatpush.xpose.msra.mxu0 %v427
        %737 = vmatpush.xpose.msra.mxu0 %v426
        %738 = vmatpush.xpose.msra.mxu0 %v425
        %739 = vmatpush.xpose.msra.mxu0 %v424
        %740 = vmatpush.xpose.msra.mxu0 %v423
        %741 = vmatpush.xpose.msra.mxu0 %v422
        %742 = vmatpush.xpose.msra.mxu0 %v421
        %743 = vmatpush.xpose.msra.mxu0 %v420
        %744 = vmatpush.xpose.msra.mxu0 %v419
        %745 = vmatpush.xpose.msra.mxu0 %v418
        %746 = vmatpush.xpose.msra.mxu0 %v417
        %747 = vmatpush.xpose.msra.mxu0 %v416
        %748 = vmatpush.xpose.msra.mxu0 %v415
        %749 = vmatpush.xpose.msra.mxu0 %v414
        %750 = vmatpush.xpose.msra.mxu0 %v413
        %751 = vmatmul.f32.gmra.mxu0 %v220
        %v752 = vpop.f32.mrf.mxu0
        %v753 = vadd.f32 %v494, %v752
        %754 = vdwg.mxu0
        %755 = vmatpush.xpose.msra.mxu0 %v444
        %756 = vmatpush.xpose.msra.mxu0 %v443
        %757 = vmatpush.xpose.msra.mxu0 %v442
        %758 = vmatpush.xpose.msra.mxu0 %v441
        %759 = vmatpush.xpose.msra.mxu0 %v440
        %760 = vmatpush.xpose.msra.mxu0 %v439
        %761 = vmatpush.xpose.msra.mxu0 %v438
        %762 = vmatpush.xpose.msra.mxu0 %v437
        %763 = vmatpush.xpose.msra.mxu0 %v436
        %764 = vmatpush.xpose.msra.mxu0 %v435
        %765 = vmatpush.xpose.msra.mxu0 %v434
        %766 = vmatpush.xpose.msra.mxu0 %v433
        %767 = vmatpush.xpose.msra.mxu0 %v432
        %768 = vmatpush.xpose.msra.mxu0 %v431
        %769 = vmatpush.xpose.msra.mxu0 %v430
        %770 = vmatpush.xpose.msra.mxu0 %v429
        %771 = vmatmul.f32.gmra.mxu0 %v220
        %v772 = vpop.f32.mrf.mxu0
        %v773 = vadd.f32 %v494, %v772
        %774 = vdwg.mxu0
        %775 = vmatpush.xpose.msra.mxu0 %v460
        %776 = vmatpush.xpose.msra.mxu0 %v459
        %777 = vmatpush.xpose.msra.mxu0 %v458
        %778 = vmatpush.xpose.msra.mxu0 %v457
        %779 = vmatpush.xpose.msra.mxu0 %v456
        %780 = vmatpush.xpose.msra.mxu0 %v455
        %781 = vmatpush.xpose.msra.mxu0 %v454
        %782 = vmatpush.xpose.msra.mxu0 %v453
        %783 = vmatpush.xpose.msra.mxu0 %v452
        %784 = vmatpush.xpose.msra.mxu0 %v451
        %785 = vmatpush.xpose.msra.mxu0 %v450
        %786 = vmatpush.xpose.msra.mxu0 %v449
        %787 = vmatpush.xpose.msra.mxu0 %v448
        %788 = vmatpush.xpose.msra.mxu0 %v447
        %789 = vmatpush.xpose.msra.mxu0 %v446
        %790 = vmatpush.xpose.msra.mxu0 %v445
        %791 = vmatmul.f32.gmra.mxu0 %v220
        %v792 = vpop.f32.mrf.mxu0
        %v793 = vadd.f32 %v494, %v792
        %794 = vdwg.mxu0
        %795 = vmatpush.xpose.msra.mxu0 %v476
        %796 = vmatpush.xpose.msra.mxu0 %v475
        %797 = vmatpush.xpose.msra.mxu0 %v474
        %798 = vmatpush.xpose.msra.mxu0 %v473
        %799 = vmatpush.xpose.msra.mxu0 %v472
        %800 = vmatpush.xpose.msra.mxu0 %v471
        %801 = vmatpush.xpose.msra.mxu0 %v470
        %802 = vmatpush.xpose.msra.mxu0 %v469
        %803 = vmatpush.xpose.msra.mxu0 %v468
        %804 = vmatpush.xpose.msra.mxu0 %v467
        %805 = vmatpush.xpose.msra.mxu0 %v466
        %806 = vmatpush.xpose.msra.mxu0 %v465
        %807 = vmatpush.xpose.msra.mxu0 %v464
        %808 = vmatpush.xpose.msra.mxu0 %v463
        %809 = vmatpush.xpose.msra.mxu0 %v462
        %810 = vmatpush.xpose.msra.mxu0 %v461
        %811 = vmatmul.f32.gmra.mxu0 %v220
        %v812 = vpop.f32.mrf.mxu0
        %v813 = vadd.f32 %v494, %v812
        %814 = vdwg.mxu0
        %815 = vmatpush.xpose.msra.mxu0 %v492
        %816 = vmatpush.xpose.msra.mxu0 %v491
        %817 = vmatpush.xpose.msra.mxu0 %v490
        %818 = vmatpush.xpose.msra.mxu0 %v489
        %819 = vmatpush.xpose.msra.mxu0 %v488
        %820 = vmatpush.xpose.msra.mxu0 %v487
        %821 = vmatpush.xpose.msra.mxu0 %v486
        %822 = vmatpush.xpose.msra.mxu0 %v485
        %823 = vmatpush.xpose.msra.mxu0 %v484
        %824 = vmatpush.xpose.msra.mxu0 %v483
        %825 = vmatpush.xpose.msra.mxu0 %v482
        %826 = vmatpush.xpose.msra.mxu0 %v481
        %827 = vmatpush.xpose.msra.mxu0 %v480
        %828 = vmatpush.xpose.msra.mxu0 %v479
        %829 = vmatpush.xpose.msra.mxu0 %v478
        %830 = vmatpush.xpose.msra.mxu0 %v477
        %831 = vmatmul.f32.gmra.mxu0 %v220
        %v832 = vpop.f32.mrf.mxu0
        %v833 = vadd.f32 %v494, %v832
        %834 = vdwg.mxu0
        %v851 = vrot.slane %v533, 4
        %v852 = vrot.slane %v573, 4
        %v853 = vrot.slane %v613, 4
        %v854 = vrot.slane %v653, 4
        %v855 = vrot.slane %v693, 4
        %v856 = vrot.slane %v733, 4
        %v857 = vrot.slane %v773, 4
        %v858 = vrot.slane %v813, 4
        %vm859 = vcmask 1043456
        %v860 = vsel %vm859, %v513, %v851
        %v861 = vsel %vm859, %v553, %v852
        %v862 = vsel %vm859, %v593, %v853
        %v863 = vsel %vm859, %v633, %v854
        %v864 = vsel %vm859, %v673, %v855
        %v865 = vsel %vm859, %v713, %v856
        %v866 = vsel %vm859, %v753, %v857
        %v867 = vsel %vm859, %v793, %v858
        %876 = vst [vmem:[%s213] sm:$0xff] %v860
        %877 = vst [vmem:[%s213 + $0x8] sm:$0xff] %v861
        %878 = vst [vmem:[%s213 + $0x10] sm:$0xff] %v862
        %879 = vst [vmem:[%s213 + $0x18] sm:$0xff] %v863
        %880 = vst [vmem:[%s213 + $0x20] sm:$0xff] %v864
        %881 = vst [vmem:[%s213 + $0x28] sm:$0xff] %v865
        %882 = vst [vmem:[%s213 + $0x30] sm:$0xff] %v866
        %883 = vst [vmem:[%s213 + $0x38] sm:$0xff] %v867
        %884 = vst [vmem:[%s213 + $0x40] sm:$0xf] %v833
        %s885 = sand.u32 %s98, 1
        %s886 = scalar_lea.sflag [#allocation5], %s885
        %s887 = sand.u32 %s98, 1
        %s888 = smul.addr %s887, 68
        %s889 = scalar_lea.vmem [#allocation8], %s888
        // Predicated region
        $region41: #{tpu_custom_call.1} parent=31 // pred_check
          %p890 = pneg %p108
        $region42: #{tpu_custom_call.1} parent=31 // pred_check_branch
          %892 = sbr.rel (%p890) target = $region44
        $region43: #{tpu_custom_call.1} parent=31 // pred_region
          %s893 = smul.u32 17, %s22
          %895 = vsyncadd %s886, 0
          %s896 = smul.addr %s893, 4
          %s897 = scalar_lea.hbm %s3, %s896
          %s899 = sshll.u32 %s889, 4
          %s900 = int_to_ptr.vmem [resolvable:$true] %s899
          %s901 = sshll.u32 %s897, 4
          %s902 = int_to_ptr.hbm [resolvable:$true] %s901
          %904 = dma.vmem_to_hbm [thread:$0]  %s900, 1088, %s902, %s886
        $region44: #{tpu_custom_call.1} parent=31 // pred_fallthru
          _
      $region32: #{tpu_custom_call.1} parent=5 // pred_fallthru
        _
      %p905 = scmp.le.s32.totalorder 2, %s17
      // Predicated region
      $region45: #{tpu_custom_call.1} parent=5 // pred_check
        %p906 = pneg %p905
      $region46: #{tpu_custom_call.1} parent=5 // pred_check_branch
        %908 = sbr.rel (%p906) target = $region48
      $region47: #{tpu_custom_call.1} parent=5 // pred_region
        %s909 = ssub.s32 %s17, 2
        // Predicated region
        $region49: #{tpu_custom_call.1} parent=47 // pred_check
          %p910 = pneg %p114
        $region50: #{tpu_custom_call.1} parent=47 // pred_check_branch
          %912 = sbr.rel (%p910) target = $region52
        $region51: #{tpu_custom_call.1} parent=47 // pred_region
          %s913 = sand.u32 %s99, 1
          %s914 = scalar_lea.sflag [#allocation5], %s913
          %s915 = sand.u32 %s99, 1
          %s916 = smul.addr %s915, 68
          %s917 = scalar_lea.vmem [#allocation8], %s916
          %919 = dma.done %s914, 1088
        $region52: #{tpu_custom_call.1} parent=47 // pred_fallthru
          _
      $region48: #{tpu_custom_call.1} parent=5 // pred_fallthru
        _
    $region6: #{tpu_custom_call.1} parent=1 // loop_footer
      %s21 = sadd.s32 1, %s17
    $region7: #{tpu_custom_call.1} parent=1 // loop_footer_branch
      %16 = sbr.rel target = $region3
    $region8: #{tpu_custom_call.1} parent=1 // loop_exit
      _
    %920 = vsyncpa [#allocation4], 1
    %s921 = scalar_lea.sflag [#allocation4], 1
    %922 = vsyncpa %s921, 1
    %923 = vsyncpa [#allocation7], 1
    %924 = vsyncpa [#allocation5], 1
    %s925 = scalar_lea.sflag [#allocation5], 1
    %926 = vsyncpa %s925, 1

</llo_original>
